<compile_context>
chip_gen: v6e
topology: v6e:2x2x1
jax: 0.10.0
libtpu: 0.0.40
codegen_flags: <defaults>
</compile_context>

<pallas_src>
import functools

import jax
import jax.numpy as jnp
from jax.experimental import pallas as pl
from jax.experimental.pallas import tpu as pltpu


def _bn_kernel(x_ref, g_ref, b_ref, o_ref, *, eps, channel_tile):
    # x_ref: (NM, channel_tile, T) — each block holds the FULL reduction
    # extents (NM and T), so per-channel mean/var are exact batch stats.
    i = pl.program_id(0)
    x = x_ref[...].astype(jnp.float32)
    nm, tc, t = x.shape
    inv_cnt = 1.0 / (nm * t)

    # Per-channel batch statistics (biased variance, like BN training forward).
    s = jnp.sum(x, axis=0)                                  # (tc, T)
    mean = jnp.sum(s, axis=-1, keepdims=True) * inv_cnt     # (tc, 1)
    diff = x - mean                                         # (NM, tc, T)
    sq = jnp.sum(diff * diff, axis=0)                       # (tc, T)
    var = jnp.sum(sq, axis=-1, keepdims=True) * inv_cnt     # (tc, 1)
    inv = jax.lax.rsqrt(var + eps)                          # (tc, 1)

    # gamma/beta are resident in full; slice the rows for this channel tile.
    if channel_tile == g_ref.shape[0]:
        g = g_ref[...].astype(jnp.float32)                  # (tc, 1)
        b = b_ref[...].astype(jnp.float32)
    else:
        c0 = pl.multiple_of(i * channel_tile, channel_tile)
        g = g_ref[pl.ds(c0, channel_tile), :].astype(jnp.float32)
        b = b_ref[pl.ds(c0, channel_tile), :].astype(jnp.float32)

    o_ref[...] = (diff * (inv * g) + b).astype(o_ref.dtype)


def _choose_channel_tile(c_total, nm, t, itemsize, budget_bytes, min_grid=4):
    """Largest legal channel tile whose (in+out, double-buffered) blocks fit."""
    bytes_per_row = nm * t * itemsize * 4  # 2 input bufs + 2 output bufs
    max_rows = int(budget_bytes // max(bytes_per_row, 1))
    if c_total % 8 != 0:
        # Without padding the activation, only a full-extent channel block
        # satisfies the TPU (8, 128) block-shape rule.
        return c_total if c_total <= max_rows else None
    cands = [d for d in range(8, c_total + 1, 8)
             if c_total % d == 0 and d <= max_rows]
    if not cands:
        # Even an 8-row block busts the budget (enormous N*M*T).
        # TODO(synk): split the reduction axis with a two-phase sum/sum-sq
        # accumulation instead of requiring full-(N*M, T) residency per block.
        return 8
    ok = [d for d in cands if c_total // d >= min_grid]
    if ok:
        even = [d for d in ok if (c_total // d) % 2 == 0]  # v7x: 2 TensorCores
        return max(even) if even else max(ok)
    return max(cands)


def _batchnorm1d_pallas(x3d, gamma, beta, *, eps=1e-5,
                        block_vmem_budget=32 << 20):
    """x3d: (NM, C_total, T). Per-channel batch-norm over the (NM, T) axes."""
    nm, c_total, t = x3d.shape
    itemsize = jnp.dtype(x3d.dtype).itemsize

    tile = _choose_channel_tile(c_total, nm, t, itemsize, block_vmem_budget)
    if tile is None:
        # Rare fallback: channel count not a multiple of 8 AND too large for a
        # single resident block -> pad channels (costs one extra HBM pass).
        pad = (-c_total) % 8
        x3d = jnp.pad(x3d, ((0, 0), (0, pad), (0, 0)))
        gamma = jnp.pad(gamma, ((0, pad),), constant_values=1.0)
        beta = jnp.pad(beta, ((0, pad),), constant_values=0.0)
        tile = _choose_channel_tile(c_total + pad, nm, t, itemsize,
                                    block_vmem_budget)
    c_full = x3d.shape[1]

    g2 = gamma.reshape(c_full, 1).astype(jnp.float32)
    b2 = beta.reshape(c_full, 1).astype(jnp.float32)

    grid = (c_full // tile,)
    out = pl.pallas_call(
        functools.partial(_bn_kernel, eps=eps, channel_tile=tile),
        out_shape=jax.ShapeDtypeStruct((nm, c_full, t), x3d.dtype),
        grid_spec=pltpu.PrefetchScalarGridSpec(
            num_scalar_prefetch=0,
            grid=grid,
            in_specs=[
                # Activation: full (NM, T) extents, tiled along channels.
                pl.BlockSpec((nm, tile, t), lambda i: (0, i, 0)),
                # gamma/beta: constant block index -> DMA'd once, stays resident.
                pl.BlockSpec((c_full, 1), lambda i: (0, 0)),
                pl.BlockSpec((c_full, 1), lambda i: (0, 0)),
            ],
            out_specs=pl.BlockSpec((nm, tile, t), lambda i: (0, i, 0)),
        ),
        compiler_params=pltpu.CompilerParams(
            dimension_semantics=("parallel",),
            vmem_limit_bytes=48 << 20,  # fits v5e/v6e/v7x with headroom
        ),
    )(x3d, g2, b2)

    return out[:, :c_total, :]


def data_norm_layer(x, gamma, beta, *, eps=1e-5):
    """Forward pass of DataNormLayer (data_bn=True).

    x: (N, C, T, V, M)
    gamma, beta: (C*V,) BatchNorm1d affine params (channel index = v*C + c,
                 i.e. the order produced by the permute in the module).
    returns: (N*M, C, T, V)
    """
    N, C, T, V, M = x.shape
    # permute(0,4,3,1,2) + view -> (N*M, V*C, T)   (necessary layout pass)
    x_p = jnp.transpose(x, (0, 4, 3, 1, 2)).reshape(N * M, V * C, T)
    # TODO(synk): running_mean/running_var buffers are not tracked/updated
    # (kernel implements the training-mode forward statistics only).
    y = _batchnorm1d_pallas(x_p, gamma, beta, eps=eps)
    # view(N, M, V, C, T) -> permute(0,1,3,4,2) -> view(N*M, C, T, V)
    y = y.reshape(N, M, V, C, T)
    return jnp.transpose(y, (0, 1, 3, 4, 2)).reshape(N * M, C, T, V)


def _reference(x, gamma, beta, eps=1e-5):
    """Pure-JAX reference mirroring the PyTorch forward (training-mode BN)."""
    N, C, T, V, M = x.shape
    xb = jnp.transpose(x, (0, 4, 3, 1, 2)).reshape(N * M, V * C, T)
    mean = jnp.mean(xb, axis=(0, 2), keepdims=True)
    var = jnp.mean((xb - mean) ** 2, axis=(0, 2), keepdims=True)
    y = (xb - mean) / jnp.sqrt(var + eps)
    y = y * gamma.reshape(1, -1, 1) + beta.reshape(1, -1, 1)
    y = y.reshape(N, M, V, C, T)
    return jnp.transpose(y, (0, 1, 3, 4, 2)).reshape(N * M, C, T, V)


if __name__ == "__main__":
    # Small shapes consistent with the module: x is (N, C, T, V, M).
    N, C, T, V, M = 2, 4, 8, 16, 2
    key = jax.random.PRNGKey(0)
    kx, kg, kb = jax.random.split(key, 3)
    x = jax.random.normal(kx, (N, C, T, V, M), dtype=jnp.float32)

    # BatchNorm1d(C*V) affine params (perturbed from init to exercise the
    # scale/shift path).
    gamma = 1.0 + 0.1 * jax.random.normal(kg, (C * V,), dtype=jnp.float32)
    beta = 0.1 * jax.random.normal(kb, (C * V,), dtype=jnp.float32)

    out = data_norm_layer(x, gamma, beta)
    out = jax.block_until_ready(out)

    ref = _reference(x, gamma, beta)
    assert out.shape == (N * M, C, T, V)
    assert jnp.allclose(out, ref, atol=1e-4, rtol=1e-4)

    print("KERNEL_OK")
</pallas_src>

<mosaic_0001>
module attributes {stable_mosaic.version = 11 : i64} {
  func.func @_bn_kernel(%arg0: i32, %arg1: memref<4x16x8xf32, #tpu.memory_space<vmem>>, %arg2: memref<64x1xf32, #tpu.memory_space<vmem>>, %arg3: memref<64x1xf32, #tpu.memory_space<vmem>>, %arg4: memref<4x16x8xf32, #tpu.memory_space<vmem>>) attributes {dimension_semantics = [#tpu.dimension_semantics<parallel>], iteration_bounds = array<i64: 4>, scalar_prefetch = 0 : i64, scratch_operands = 0 : i64, tpu.core_type = #tpu.core_type<tc>, window_params = [{transform_indices = @transform_0, window_bounds = array<i64: 4, 16, 8>}, {pipeline_mode = #tpu.pipeline_mode<synchronous>, transform_indices = @transform_1, window_bounds = array<i64: 64, 1>}, {pipeline_mode = #tpu.pipeline_mode<synchronous>, transform_indices = @transform_2, window_bounds = array<i64: 64, 1>}, {transform_indices = @transform_3, window_bounds = array<i64: 4, 16, 8>}]} {
    %c0 = arith.constant 0 : index
    %c0_0 = arith.constant 0 : index
    %c0_1 = arith.constant 0 : index
    %0 = vector.load %arg1[%c0, %c0_0, %c0_1] : memref<4x16x8xf32, #tpu.memory_space<vmem>>, vector<4x16x8xf32>
    %cst = arith.constant dense<0.000000e+00> : vector<16x8xf32>
    %1 = vector.multi_reduction <add>, %0, %cst [0] : vector<4x16x8xf32> to vector<16x8xf32>
    %cst_2 = arith.constant dense<0.000000e+00> : vector<16xf32>
    %2 = vector.multi_reduction <add>, %1, %cst_2 [1] : vector<16x8xf32> to vector<16xf32>
    %3 = vector.shape_cast %2 : vector<16xf32> to vector<16x1xf32>
    %cst_3 = arith.constant 3.125000e-02 : f32
    %4 = vector.broadcast %cst_3 : f32 to vector<16x1xf32>
    %5 = arith.mulf %3, %4 : vector<16x1xf32>
    %6 = vector.shape_cast %5 : vector<16x1xf32> to vector<1x16x1xf32>
    %7 = vector.broadcast %6 : vector<1x16x1xf32> to vector<4x16x8xf32>
    %8 = arith.subf %0, %7 : vector<4x16x8xf32>
    %9 = arith.mulf %8, %8 : vector<4x16x8xf32>
    %cst_4 = arith.constant dense<0.000000e+00> : vector<16x8xf32>
    %10 = vector.multi_reduction <add>, %9, %cst_4 [0] : vector<4x16x8xf32> to vector<16x8xf32>
    %cst_5 = arith.constant dense<0.000000e+00> : vector<16xf32>
    %11 = vector.multi_reduction <add>, %10, %cst_5 [1] : vector<16x8xf32> to vector<16xf32>
    %12 = vector.shape_cast %11 : vector<16xf32> to vector<16x1xf32>
    %cst_6 = arith.constant 3.125000e-02 : f32
    %13 = vector.broadcast %cst_6 : f32 to vector<16x1xf32>
    %14 = arith.mulf %12, %13 : vector<16x1xf32>
    %cst_7 = arith.constant 9.99999974E-6 : f32
    %15 = vector.broadcast %cst_7 : f32 to vector<16x1xf32>
    %16 = arith.addf %14, %15 : vector<16x1xf32>
    %17 = math.rsqrt %16 : vector<16x1xf32>
    %c16_i32 = arith.constant 16 : i32
    %18 = arith.muli %arg0, %c16_i32 : i32
    %19 = tpu.assume_multiple %18, 16 : i32
    %20 = arith.index_cast %19 : i32 to index
    %c0_8 = arith.constant 0 : index
    %21 = vector.load %arg2[%20, %c0_8] : memref<64x1xf32, #tpu.memory_space<vmem>>, vector<16x1xf32>
    %22 = arith.index_cast %19 : i32 to index
    %c0_9 = arith.constant 0 : index
    %23 = vector.load %arg3[%22, %c0_9] : memref<64x1xf32, #tpu.memory_space<vmem>>, vector<16x1xf32>
    %24 = arith.mulf %17, %21 : vector<16x1xf32>
    %25 = vector.shape_cast %24 : vector<16x1xf32> to vector<1x16x1xf32>
    %26 = vector.broadcast %25 : vector<1x16x1xf32> to vector<4x16x8xf32>
    %27 = arith.mulf %8, %26 : vector<4x16x8xf32>
    %28 = vector.shape_cast %23 : vector<16x1xf32> to vector<1x16x1xf32>
    %29 = vector.broadcast %28 : vector<1x16x1xf32> to vector<4x16x8xf32>
    %30 = arith.addf %27, %29 : vector<4x16x8xf32>
    %c0_10 = arith.constant 0 : index
    %c0_11 = arith.constant 0 : index
    %c0_12 = arith.constant 0 : index
    %31 = vector.load %arg4[%c0_10, %c0_11, %c0_12] : memref<4x16x8xf32, #tpu.memory_space<vmem>>, vector<4x16x8xf32>
    tpu.vector_store %arg4[%c0_10, %c0_11, %c0_12], %30 {strides = array<i32>} : memref<4x16x8xf32, #tpu.memory_space<vmem>>, vector<4x16x8xf32>,
    return
  }
  func.func @transform_0(%arg0: i32) -> (i32, i32, i32) {
    %c0_i32 = arith.constant 0 : i32
    %c0_i32_0 = arith.constant 0 : i32
    %c0_i32_1 = arith.constant 0 : i32
    return %c0_i32, %arg0, %c0_i32_0 : i32, i32, i32
  }
  func.func @transform_1(%arg0: i32) -> (i32, i32) {
    %c0_i32 = arith.constant 0 : i32
    %c0_i32_0 = arith.constant 0 : i32
    %c0_i32_1 = arith.constant 0 : i32
    return %c0_i32, %c0_i32_0 : i32, i32
  }
  func.func @transform_2(%arg0: i32) -> (i32, i32) {
    %c0_i32 = arith.constant 0 : i32
    %c0_i32_0 = arith.constant 0 : i32
    %c0_i32_1 = arith.constant 0 : i32
    return %c0_i32, %c0_i32_0 : i32, i32
  }
  func.func @transform_3(%arg0: i32) -> (i32, i32, i32) {
    %c0_i32 = arith.constant 0 : i32
    %c0_i32_0 = arith.constant 0 : i32
    %c0_i32_1 = arith.constant 0 : i32
    return %c0_i32, %arg0, %c0_i32_0 : i32, i32, i32
  }
}

</mosaic_0001>

<llo_original>
// kernel: tpu_custom_call.1
$region0: #{tpu_custom_call.1}
  #allocation0 [shape = 'u32[]', space=smem, size = 0x4, offset = 0x4, fixed_abs, tag = 'smem constant byte address 0x4 - core index']
  #allocation1 [shape = 'u32[144,128]{1,0:T(1,128)}', space=vmem, size = 0x12000, scoped, tag = 'internal scratch']
  %s0 = inlined_call_operand.vmem [shape: f32[4,64,8], index: 0, kind: input, shape index: {}]
  %s1 = inlined_call_operand.vmem [shape: f32[64,1], index: 1, kind: input, shape index: {}]
  %s2 = inlined_call_operand.vmem [shape: f32[64,1], index: 2, kind: input, shape index: {}]
  %s3 = inlined_call_operand.vmem [shape: f32[4,64,8], index: 3, kind: output, shape index: {}]
  %s4 = sld [smem:[#allocation0]]
  $region117: #{tpu_custom_call.1} parent=0
    _
  %s6 = ssub.s32 1, %s4
  %s7 = scalar_select 0, %s6, %s4
  $region1: #{tpu_custom_call.1} parent=0
    #allocation2 [shape = 'u8[65536]{0}', space=vmem, size = 0x10000, scoped, tag = 'input window, operand 0']
    #allocation3 [shape = 'u8[65536]{0}', space=vmem, size = 0x10000, scoped, tag = 'output window, operand 0']
    loop: start=0, step=1, limit=6
    $region2: #{tpu_custom_call.1} parent=1 // loop_pre_header
      _
    $region3: #{tpu_custom_call.1} parent=1 // loop_header
      %s9 = sphi 0, %s13
      %p10 = scmp.ge.s32.totalorder %s9, 6
      %s19 = sphi 0, %s21
      %s22 = sphi 0, %s19
      %s23 = sphi 0, %s22
      %s39 = sphi 0, %s23
      %s43 = sphi 0, %s43
      %s45 = sphi 0, %s43
      %s46 = sphi 0, %s45
      %s60 = sphi 0, %s46
      %s64 = sphi 0, %s64
      %s66 = sphi 0, %s64
      %s67 = sphi 0, %s66
      %s81 = sphi 0, %s67
      %s87 = sphi 0, %s89
      %s90 = sphi 0, %s87
      %s91 = sphi 0, %s90
      %s107 = sphi 0, %s91
    $region4: #{tpu_custom_call.1} parent=1 // loop_header_branch
      %12 = sbr.rel (%p10) target = $region8
    $region5: #{tpu_custom_call.1} parent=1 // loop_body
      %s14 = ssub.s32 %s9, 1
      %s15 = ssub.s32 %s9, 2
      %s16 = sadd.s32 %s9, 1
      %s17 = ssub.s32 %s9, %s16
      %p18 = scmp.eq.s32.totalorder %s17, 0
      %s20 = sadd.s32 %s19, 1
      %s21 = scalar_select %p18, %s19, %s20
      %p24 = pneg %p18
      %p25 = scmp.eq.s32.totalorder %s9, 3
      %p26 = por %p24, %p25
      %p27 = scmp.ne.s32.totalorder %s19, %s22
      %p28 = scmp.eq.s32.totalorder %s9, 0
      %p29 = por %p27, %p28
      %p30 = scmp.ne.s32.totalorder %s19, %s22
      %p31 = scmp.eq.s32.totalorder %s14, 3
      %p32 = por %p30, %p31
      %p33 = scmp.ne.s32.totalorder %s22, %s23
      %p34 = scmp.eq.s32.totalorder %s14, 0
      %p35 = por %p33, %p34
      %p36 = scmp.ne.s32.totalorder %s22, %s23
      %p37 = scmp.eq.s32.totalorder %s15, 3
      %p38 = por %p36, %p37
      %p40 = scmp.ne.s32.totalorder %s23, %s39
      %p41 = scmp.eq.s32.totalorder %s15, 0
      %p42 = por %p40, %p41
      %s44 = sadd.s32 %s43, 1
      %p47 = scmp.eq.s32.totalorder %s9, 3
      %p48 = scmp.ne.s32.totalorder %s43, %s45
      %p49 = scmp.eq.s32.totalorder %s9, 0
      %p50 = por %p48, %p49
      %p51 = scmp.ne.s32.totalorder %s43, %s45
      %p52 = scmp.eq.s32.totalorder %s14, 3
      %p53 = por %p51, %p52
      %p54 = scmp.ne.s32.totalorder %s45, %s46
      %p55 = scmp.eq.s32.totalorder %s14, 0
      %p56 = por %p54, %p55
      %p57 = scmp.ne.s32.totalorder %s45, %s46
      %p58 = scmp.eq.s32.totalorder %s15, 3
      %p59 = por %p57, %p58
      %p61 = scmp.ne.s32.totalorder %s46, %s60
      %p62 = scmp.eq.s32.totalorder %s15, 0
      %p63 = por %p61, %p62
      %s65 = sadd.s32 %s64, 1
      %p68 = scmp.eq.s32.totalorder %s9, 3
      %p69 = scmp.ne.s32.totalorder %s64, %s66
      %p70 = scmp.eq.s32.totalorder %s9, 0
      %p71 = por %p69, %p70
      %p72 = scmp.ne.s32.totalorder %s64, %s66
      %p73 = scmp.eq.s32.totalorder %s14, 3
      %p74 = por %p72, %p73
      %p75 = scmp.ne.s32.totalorder %s66, %s67
      %p76 = scmp.eq.s32.totalorder %s14, 0
      %p77 = por %p75, %p76
      %p78 = scmp.ne.s32.totalorder %s66, %s67
      %p79 = scmp.eq.s32.totalorder %s15, 3
      %p80 = por %p78, %p79
      %p82 = scmp.ne.s32.totalorder %s67, %s81
      %p83 = scmp.eq.s32.totalorder %s15, 0
      %p84 = por %p82, %p83
      %s85 = ssub.s32 %s9, %s16
      %p86 = scmp.eq.s32.totalorder %s85, 0
      %s88 = sadd.s32 %s87, 1
      %s89 = scalar_select %p86, %s87, %s88
      %p92 = pneg %p86
      %p93 = scmp.eq.s32.totalorder %s9, 3
      %p94 = por %p92, %p93
      %p95 = scmp.ne.s32.totalorder %s87, %s90
      %p96 = scmp.eq.s32.totalorder %s9, 0
      %p97 = por %p95, %p96
      %p98 = scmp.ne.s32.totalorder %s87, %s90
      %p99 = scmp.eq.s32.totalorder %s14, 3
      %p100 = por %p98, %p99
      %p101 = scmp.ne.s32.totalorder %s90, %s91
      %p102 = scmp.eq.s32.totalorder %s14, 0
      %p103 = por %p101, %p102
      %p104 = scmp.ne.s32.totalorder %s90, %s91
      %p105 = scmp.eq.s32.totalorder %s15, 3
      %p106 = por %p104, %p105
      %p108 = scmp.ne.s32.totalorder %s91, %s107
      %p109 = scmp.eq.s32.totalorder %s15, 0
      %p110 = por %p108, %p109
      %p111 = scmp.le.s32.totalorder 1, %s9
      %p112 = scmp.lt.s32.totalorder %s9, 5
      %p113 = pnand %p111, %p112
      %p114 = pneg %p113
      // Predicated region
      $region9: #{tpu_custom_call.1} parent=5 // pred_check
        _
      $region10: #{tpu_custom_call.1} parent=5 // pred_check_branch
        %116 = sbr.rel (%p113) target = $region12
      $region11: #{tpu_custom_call.1} parent=5 // pred_region
        %s117 = ssub.s32 %s9, 1
        // Predicated region
        $region13: #{tpu_custom_call.1} parent=11 // pred_check
          %p118 = pneg %p56
        $region14: #{tpu_custom_call.1} parent=11 // pred_check_branch
          %120 = sbr.rel (%p118) target = $region16
        $region15: #{tpu_custom_call.1} parent=11 // pred_region
          _
        $region16: #{tpu_custom_call.1} parent=11 // pred_fallthru
          _
        // Predicated region
        $region17: #{tpu_custom_call.1} parent=11 // pred_check
          %p121 = pneg %p77
        $region18: #{tpu_custom_call.1} parent=11 // pred_check_branch
          %123 = sbr.rel (%p121) target = $region20
        $region19: #{tpu_custom_call.1} parent=11 // pred_region
          _
        $region20: #{tpu_custom_call.1} parent=11 // pred_fallthru
          _
      $region12: #{tpu_custom_call.1} parent=5 // pred_fallthru
        _
      %p124 = scmp.lt.s32.totalorder %s9, 4
      // Predicated region
      $region21: #{tpu_custom_call.1} parent=5 // pred_check
        %p125 = pneg %p124
      $region22: #{tpu_custom_call.1} parent=5 // pred_check_branch
        %127 = sbr.rel (%p125) target = $region24
      $region23: #{tpu_custom_call.1} parent=5 // pred_region
        // Predicated region
        $region25: #{tpu_custom_call.1} parent=23 // pred_check
          %p128 = pneg %p29
        $region26: #{tpu_custom_call.1} parent=23 // pred_check_branch
          %130 = sbr.rel (%p128) target = $region28
        $region27: #{tpu_custom_call.1} parent=23 // pred_region
          %s131 = sand.u32 %s19, 1
          %s132 = sand.u32 %s19, 1
          %s133 = smul.addr %s132, 64
          %s134 = scalar_lea.vmem [#allocation2], %s133
          %s135 = smul.u32 2, %s9
          %s136 = smul.addr %s135, 8
          %s137 = scalar_lea.vmem %s0, %s136
          // Predicated region
          $region29: #{tpu_custom_call.1} parent=27 // pred_check
            _
          $region30: #{tpu_custom_call.1} parent=27 // pred_check_branch
            %139 = sbr.rel (0) target = $region32
          $region31: #{tpu_custom_call.1} parent=27 // pred_region
            // Predicated region
            $region33: #{tpu_custom_call.1} parent=31 // pred_check
              _
            $region34: #{tpu_custom_call.1} parent=31 // pred_check_branch
              %141 = sbr.rel (0) target = $region36
            $region35: #{tpu_custom_call.1} parent=31 // pred_region
              // Predicated region
              $region48: #{tpu_custom_call.1} parent=35 // pred_check
                _
              $region49: #{tpu_custom_call.1} parent=35 // pred_check_branch
                %171 = sbr.rel (0) target = $region51
              $region50: #{tpu_custom_call.1} parent=35 // pred_region
                loop: start=0, step=1, limit=1
                $region52: #{tpu_custom_call.1} parent=50 // loop_pre_header
                  _
                $region53: #{tpu_custom_call.1} parent=50 // loop_header
                  %s173 = sphi 0, %s177
                  %p174 = scmp.ge.s32.totalorder %s173, 1
                  %s178 = sphi %s137, %s137
                  %s179 = sphi %s134, %s134
                $region54: #{tpu_custom_call.1} parent=50 // loop_header_branch
                  %176 = sbr.rel (%p174) target = $region58
                $region55: #{tpu_custom_call.1} parent=50 // loop_body
                  %v180 = vld [vmem:[%s178] sm:$0xff]
                  %181 = vst [vmem:[%s179] sm:$0xff] %v180
                  %v182 = vld [vmem:[%s178 + $0x8] sm:$0xff]
                  %183 = vst [vmem:[%s179 + $0x8] sm:$0xff] %v182
                  %v184 = vld [vmem:[%s178 + $0x40] sm:$0xff]
                  %185 = vst [vmem:[%s179 + $0x10] sm:$0xff] %v184
                  %v186 = vld [vmem:[%s178 + $0x48] sm:$0xff]
                  %187 = vst [vmem:[%s179 + $0x18] sm:$0xff] %v186
                  %v188 = vld [vmem:[%s178 + $0x80] sm:$0xff]
                  %189 = vst [vmem:[%s179 + $0x20] sm:$0xff] %v188
                  %v190 = vld [vmem:[%s178 + $0x88] sm:$0xff]
                  %191 = vst [vmem:[%s179 + $0x28] sm:$0xff] %v190
                  %v192 = vld [vmem:[%s178 + $0xc0] sm:$0xff]
                  %193 = vst [vmem:[%s179 + $0x30] sm:$0xff] %v192
                  %v194 = vld [vmem:[%s178 + $0xc8] sm:$0xff]
                  %195 = vst [vmem:[%s179 + $0x38] sm:$0xff] %v194
                $region56: #{tpu_custom_call.1} parent=50 // loop_footer
                  %s177 = sadd.s32 1, %s173
                $region57: #{tpu_custom_call.1} parent=50 // loop_footer_branch
                  %172 = sbr.rel target = $region53
                $region58: #{tpu_custom_call.1} parent=50 // loop_exit
                  _
              $region51: #{tpu_custom_call.1} parent=35 // pred_fallthru
                _
              // Predicated region
              $region59: #{tpu_custom_call.1} parent=35 // pred_check
                _
              $region60: #{tpu_custom_call.1} parent=35 // pred_check_branch
                %197 = sbr.rel target = $region62
              $region61: #{tpu_custom_call.1} parent=35 // pred_region
                _
              $region62: #{tpu_custom_call.1} parent=35 // pred_fallthru
                _
            $region36: #{tpu_custom_call.1} parent=31 // pred_fallthru
              _
            // Predicated region
            $region37: #{tpu_custom_call.1} parent=31 // pred_check
              _
            $region38: #{tpu_custom_call.1} parent=31 // pred_check_branch
              %143 = sbr.rel target = $region40
            $region39: #{tpu_custom_call.1} parent=31 // pred_region
              %s145 = ssub.s32 256, 1
              loop: start=0, step=1, limit=1
              $region41: #{tpu_custom_call.1} parent=39 // loop_pre_header
                _
              $region42: #{tpu_custom_call.1} parent=39 // loop_header
                %s147 = sphi 0, %s151
                %p148 = scmp.ge.s32.totalorder %s147, 1
                %s152 = sphi %s137, %s137
                %s153 = sphi %s134, %s134
              $region43: #{tpu_custom_call.1} parent=39 // loop_header_branch
                %150 = sbr.rel (%p148) target = $region47
              $region44: #{tpu_custom_call.1} parent=39 // loop_body
                %v154 = vld [vmem:[%s152] sm:%s145]
                %155 = vst [vmem:[%s153] sm:%s145] %v154
                %v156 = vld [vmem:[%s152 + $0x8] sm:%s145]
                %157 = vst [vmem:[%s153 + $0x8] sm:%s145] %v156
                %v158 = vld [vmem:[%s152 + $0x40] sm:%s145]
                %159 = vst [vmem:[%s153 + $0x10] sm:%s145] %v158
                %v160 = vld [vmem:[%s152 + $0x48] sm:%s145]
                %161 = vst [vmem:[%s153 + $0x18] sm:%s145] %v160
                %v162 = vld [vmem:[%s152 + $0x80] sm:%s145]
                %163 = vst [vmem:[%s153 + $0x20] sm:%s145] %v162
                %v164 = vld [vmem:[%s152 + $0x88] sm:%s145]
                %165 = vst [vmem:[%s153 + $0x28] sm:%s145] %v164
                %v166 = vld [vmem:[%s152 + $0xc0] sm:%s145]
                %167 = vst [vmem:[%s153 + $0x30] sm:%s145] %v166
                %v168 = vld [vmem:[%s152 + $0xc8] sm:%s145]
                %169 = vst [vmem:[%s153 + $0x38] sm:%s145] %v168
              $region45: #{tpu_custom_call.1} parent=39 // loop_footer
                %s151 = sadd.s32 1, %s147
              $region46: #{tpu_custom_call.1} parent=39 // loop_footer_branch
                %146 = sbr.rel target = $region42
              $region47: #{tpu_custom_call.1} parent=39 // loop_exit
                _
            $region40: #{tpu_custom_call.1} parent=31 // pred_fallthru
              _
          $region32: #{tpu_custom_call.1} parent=27 // pred_fallthru
            _
          %198 = vnop
        $region28: #{tpu_custom_call.1} parent=23 // pred_fallthru
          _
      $region24: #{tpu_custom_call.1} parent=5 // pred_fallthru
        _
      %p199 = scmp.le.s32.totalorder 1, %s9
      %p200 = scmp.lt.s32.totalorder %s9, 5
      %p201 = pnand %p199, %p200
      %p202 = pneg %p201
      // Predicated region
      $region63: #{tpu_custom_call.1} parent=5 // pred_check
        _
      $region64: #{tpu_custom_call.1} parent=5 // pred_check_branch
        %204 = sbr.rel (%p201) target = $region66
      $region65: #{tpu_custom_call.1} parent=5 // pred_region
        %s205 = ssub.s32 %s9, 1
        %s206 = sand.u32 %s22, 1
        %s207 = sand.u32 %s22, 1
        %s208 = smul.addr %s207, 64
        %s209 = scalar_lea.vmem [#allocation2], %s208
        // Predicated region
        $region67: #{tpu_custom_call.1} parent=65 // pred_check
          %p210 = pneg %p35
        $region68: #{tpu_custom_call.1} parent=65 // pred_check_branch
          %212 = sbr.rel (%p210) target = $region70
        $region69: #{tpu_custom_call.1} parent=65 // pred_region
          _
        $region70: #{tpu_custom_call.1} parent=65 // pred_fallthru
          _
        %s213 = sand.u32 %s22, 1
        %s214 = sand.u32 %s22, 1
        %s215 = smul.addr %s214, 64
        %s216 = scalar_lea.vmem [#allocation2], %s215
        %p217 = pneg %p35
        %p218 = pneg %p32
        %p219 = pneg %p56
        %p220 = pneg %p53
        %p221 = pneg %p77
        %p222 = pneg %p74
        %p223 = pneg %p103
        %p224 = pneg %p100
        %s225 = sand.u32 %s90, 1
        %s226 = sand.u32 %s90, 1
        %s227 = smul.addr %s226, 64
        %s228 = scalar_lea.vmem [#allocation3], %s227
        %s229 = smul.u32 2, %s14
        %s230 = smul.u32 2, %s14
        %v231 = vld [vmem:[%s209] sm:$0xff]
        %v232 = vld [vmem:[%s209 + $0x8] sm:$0xff]
        %v233 = vld [vmem:[%s209 + $0x10] sm:$0xff]
        %v234 = vld [vmem:[%s209 + $0x18] sm:$0xff]
        %v235 = vld [vmem:[%s209 + $0x20] sm:$0xff]
        %v236 = vld [vmem:[%s209 + $0x28] sm:$0xff]
        %v237 = vld [vmem:[%s209 + $0x30] sm:$0xff]
        %v238 = vld [vmem:[%s209 + $0x38] sm:$0xff]
        %vm239 = vcmask 64512
        %v240 = vsel %vm239, %v231, 0.0
        %v241 = vsel %vm239, %v233, 0.0
        %v242 = vadd.f32 %v240, %v241
        %v243 = vsel %vm239, %v235, 0.0
        %v244 = vadd.f32 %v242, %v243
        %v245 = vsel %vm239, %v237, 0.0
        %v246 = vadd.f32 %v244, %v245
        %v247 = vsel %vm239, %v232, 0.0
        %v248 = vsel %vm239, %v234, 0.0
        %v249 = vadd.f32 %v247, %v248
        %v250 = vsel %vm239, %v236, 0.0
        %v251 = vadd.f32 %v249, %v250
        %v252 = vsel %vm239, %v238, 0.0
        %v253 = vadd.f32 %v251, %v252
        %v254 = vsel %vm239, %v246, 0.0
        %255 = vadd.xlane.f32.xlu0 %v254
        %v256 = vpop.xlane.xlu0 %255
        %v257 = vsel %vm239, %v253, 0.0
        %258 = vadd.xlane.f32.xlu0 %v257
        %v259 = vpop.xlane.xlu0 %258
        %v260 = vmul.f32 %v256, 0.03125
        %v261 = vmul.f32 %v259, 0.03125
        %v262 = vsub.f32 %v231, %v260
        %v263 = vsub.f32 %v232, %v261
        %v264 = vsub.f32 %v233, %v260
        %v265 = vsub.f32 %v234, %v261
        %v266 = vsub.f32 %v235, %v260
        %v267 = vsub.f32 %v236, %v261
        %v268 = vsub.f32 %v237, %v260
        %v269 = vsub.f32 %v238, %v261
        %v270 = vmul.f32 %v262, %v262
        %v271 = vmul.f32 %v263, %v263
        %v272 = vmul.f32 %v264, %v264
        %v273 = vmul.f32 %v265, %v265
        %v274 = vmul.f32 %v266, %v266
        %v275 = vmul.f32 %v267, %v267
        %v276 = vmul.f32 %v268, %v268
        %v277 = vmul.f32 %v269, %v269
        %v278 = vsel %vm239, %v270, 0.0
        %v279 = vsel %vm239, %v272, 0.0
        %v280 = vadd.f32 %v278, %v279
        %v281 = vsel %vm239, %v274, 0.0
        %v282 = vadd.f32 %v280, %v281
        %v283 = vsel %vm239, %v276, 0.0
        %v284 = vadd.f32 %v282, %v283
        %v285 = vsel %vm239, %v271, 0.0
        %v286 = vsel %vm239, %v273, 0.0
        %v287 = vadd.f32 %v285, %v286
        %v288 = vsel %vm239, %v275, 0.0
        %v289 = vadd.f32 %v287, %v288
        %v290 = vsel %vm239, %v277, 0.0
        %v291 = vadd.f32 %v289, %v290
        %v292 = vsel %vm239, %v284, 0.0
        %293 = vadd.xlane.f32.xlu0 %v292
        %v294 = vpop.xlane.xlu0 %293
        %v295 = vsel %vm239, %v291, 0.0
        %296 = vadd.xlane.f32.xlu0 %v295
        %v297 = vpop.xlane.xlu0 %296
        %v298 = vmul.f32 %v294, 0.03125
        %v299 = vmul.f32 %v297, 0.03125
        %v300 = vadd.f32 %v298, 1e-05
        %v301 = vadd.f32 %v299, 1e-05
        %v302 = vrsqrt.pop %v300
        %v303 = vrsqrt.pop %v301
        %s304 = smul.u32 %s14, 16
        %s305 = scalar_lea.vmem %s1, %s304
        %v306 = vld [vmem:[%s305] sm:$0xff]
        %v307 = vld [vmem:[%s305 + $0x8] sm:$0xff]
        %s308 = scalar_lea.vmem %s2, %s304
        %v309 = vld [vmem:[%s308] sm:$0xff]
        %v310 = vld [vmem:[%s308 + $0x8] sm:$0xff]
        %v311 = vmul.f32 %v302, %v306
        %v312 = vmul.f32 %v303, %v307
        %314 = vset.pattern.permute.xlu0 0
        %315 = vperm.xlu0 %314, %v311
        %v316 = vpop.permute.xlu0 %315
        %319 = vset.pattern.permute.xlu0 0
        %320 = vperm.xlu0 %319, %v312
        %v321 = vpop.permute.xlu0 %320
        %v323 = vmul.f32 %v262, %v316
        %v324 = vmul.f32 %v263, %v321
        %v325 = vmul.f32 %v264, %v316
        %v326 = vmul.f32 %v265, %v321
        %v327 = vmul.f32 %v266, %v316
        %v328 = vmul.f32 %v267, %v321
        %v329 = vmul.f32 %v268, %v316
        %v330 = vmul.f32 %v269, %v321
        %332 = vset.pattern.permute.xlu0 0
        %333 = vperm.xlu0 %332, %v309
        %v334 = vpop.permute.xlu0 %333
        %337 = vset.pattern.permute.xlu0 0
        %338 = vperm.xlu0 %337, %v310
        %v339 = vpop.permute.xlu0 %338
        %v341 = vadd.f32 %v323, %v334
        %v342 = vadd.f32 %v324, %v339
        %v343 = vadd.f32 %v325, %v334
        %v344 = vadd.f32 %v326, %v339
        %v345 = vadd.f32 %v327, %v334
        %v346 = vadd.f32 %v328, %v339
        %v347 = vadd.f32 %v329, %v334
        %v348 = vadd.f32 %v330, %v339
        %349 = vst.msk [vmem:[%s228] sm:$0xff] %vm239, %v341
        %350 = vst.msk [vmem:[%s228 + $0x8] sm:$0xff] %vm239, %v342
        %351 = vst.msk [vmem:[%s228 + $0x10] sm:$0xff] %vm239, %v343
        %352 = vst.msk [vmem:[%s228 + $0x18] sm:$0xff] %vm239, %v344
        %353 = vst.msk [vmem:[%s228 + $0x20] sm:$0xff] %vm239, %v345
        %354 = vst.msk [vmem:[%s228 + $0x28] sm:$0xff] %vm239, %v346
        %355 = vst.msk [vmem:[%s228 + $0x30] sm:$0xff] %vm239, %v347
        %356 = vst.msk [vmem:[%s228 + $0x38] sm:$0xff] %vm239, %v348
        %s357 = sand.u32 %s90, 1
        %s358 = sand.u32 %s90, 1
        %s359 = smul.addr %s358, 64
        %s360 = scalar_lea.vmem [#allocation3], %s359
        // Predicated region
        $region71: #{tpu_custom_call.1} parent=65 // pred_check
          %p361 = pneg %p100
        $region72: #{tpu_custom_call.1} parent=65 // pred_check_branch
          %363 = sbr.rel (%p361) target = $region74
        $region73: #{tpu_custom_call.1} parent=65 // pred_region
          %s364 = smul.u32 2, %s14
          %s365 = smul.addr %s364, 8
          %s366 = scalar_lea.vmem %s3, %s365
          // Predicated region
          $region75: #{tpu_custom_call.1} parent=73 // pred_check
            _
          $region76: #{tpu_custom_call.1} parent=73 // pred_check_branch
            %368 = sbr.rel (0) target = $region78
          $region77: #{tpu_custom_call.1} parent=73 // pred_region
            // Predicated region
            $region79: #{tpu_custom_call.1} parent=77 // pred_check
              _
            $region80: #{tpu_custom_call.1} parent=77 // pred_check_branch
              %370 = sbr.rel (0) target = $region82
            $region81: #{tpu_custom_call.1} parent=77 // pred_region
              // Predicated region
              $region94: #{tpu_custom_call.1} parent=81 // pred_check
                _
              $region95: #{tpu_custom_call.1} parent=81 // pred_check_branch
                %400 = sbr.rel (0) target = $region97
              $region96: #{tpu_custom_call.1} parent=81 // pred_region
                loop: start=0, step=1, limit=1
                $region98: #{tpu_custom_call.1} parent=96 // loop_pre_header
                  _
                $region99: #{tpu_custom_call.1} parent=96 // loop_header
                  %s402 = sphi 0, %s406
                  %p403 = scmp.ge.s32.totalorder %s402, 1
                  %s407 = sphi %s360, %s360
                  %s408 = sphi %s366, %s366
                $region100: #{tpu_custom_call.1} parent=96 // loop_header_branch
                  %405 = sbr.rel (%p403) target = $region104
                $region101: #{tpu_custom_call.1} parent=96 // loop_body
                  %v409 = vld [vmem:[%s407] sm:$0xff]
                  %410 = vst [vmem:[%s408] sm:$0xff] %v409
                  %v411 = vld [vmem:[%s407 + $0x8] sm:$0xff]
                  %412 = vst [vmem:[%s408 + $0x8] sm:$0xff] %v411
                  %v413 = vld [vmem:[%s407 + $0x10] sm:$0xff]
                  %414 = vst [vmem:[%s408 + $0x40] sm:$0xff] %v413
                  %v415 = vld [vmem:[%s407 + $0x18] sm:$0xff]
                  %416 = vst [vmem:[%s408 + $0x48] sm:$0xff] %v415
                  %v417 = vld [vmem:[%s407 + $0x20] sm:$0xff]
                  %418 = vst [vmem:[%s408 + $0x80] sm:$0xff] %v417
                  %v419 = vld [vmem:[%s407 + $0x28] sm:$0xff]
                  %420 = vst [vmem:[%s408 + $0x88] sm:$0xff] %v419
                  %v421 = vld [vmem:[%s407 + $0x30] sm:$0xff]
                  %422 = vst [vmem:[%s408 + $0xc0] sm:$0xff] %v421
                  %v423 = vld [vmem:[%s407 + $0x38] sm:$0xff]
                  %424 = vst [vmem:[%s408 + $0xc8] sm:$0xff] %v423
                $region102: #{tpu_custom_call.1} parent=96 // loop_footer
                  %s406 = sadd.s32 1, %s402
                $region103: #{tpu_custom_call.1} parent=96 // loop_footer_branch
                  %401 = sbr.rel target = $region99
                $region104: #{tpu_custom_call.1} parent=96 // loop_exit
                  _
              $region97: #{tpu_custom_call.1} parent=81 // pred_fallthru
                _
              // Predicated region
              $region105: #{tpu_custom_call.1} parent=81 // pred_check
                _
              $region106: #{tpu_custom_call.1} parent=81 // pred_check_branch
                %426 = sbr.rel target = $region108
              $region107: #{tpu_custom_call.1} parent=81 // pred_region
                _
              $region108: #{tpu_custom_call.1} parent=81 // pred_fallthru
                _
            $region82: #{tpu_custom_call.1} parent=77 // pred_fallthru
              _
            // Predicated region
            $region83: #{tpu_custom_call.1} parent=77 // pred_check
              _
            $region84: #{tpu_custom_call.1} parent=77 // pred_check_branch
              %372 = sbr.rel target = $region86
            $region85: #{tpu_custom_call.1} parent=77 // pred_region
              %s374 = ssub.s32 256, 1
              loop: start=0, step=1, limit=1
              $region87: #{tpu_custom_call.1} parent=85 // loop_pre_header
                _
              $region88: #{tpu_custom_call.1} parent=85 // loop_header
                %s376 = sphi 0, %s380
                %p377 = scmp.ge.s32.totalorder %s376, 1
                %s381 = sphi %s360, %s360
                %s382 = sphi %s366, %s366
              $region89: #{tpu_custom_call.1} parent=85 // loop_header_branch
                %379 = sbr.rel (%p377) target = $region93
              $region90: #{tpu_custom_call.1} parent=85 // loop_body
                %v383 = vld [vmem:[%s381] sm:%s374]
                %384 = vst [vmem:[%s382] sm:%s374] %v383
                %v385 = vld [vmem:[%s381 + $0x8] sm:%s374]
                %386 = vst [vmem:[%s382 + $0x8] sm:%s374] %v385
                %v387 = vld [vmem:[%s381 + $0x10] sm:%s374]
                %388 = vst [vmem:[%s382 + $0x40] sm:%s374] %v387
                %v389 = vld [vmem:[%s381 + $0x18] sm:%s374]
                %390 = vst [vmem:[%s382 + $0x48] sm:%s374] %v389
                %v391 = vld [vmem:[%s381 + $0x20] sm:%s374]
                %392 = vst [vmem:[%s382 + $0x80] sm:%s374] %v391
                %v393 = vld [vmem:[%s381 + $0x28] sm:%s374]
                %394 = vst [vmem:[%s382 + $0x88] sm:%s374] %v393
                %v395 = vld [vmem:[%s381 + $0x30] sm:%s374]
                %396 = vst [vmem:[%s382 + $0xc0] sm:%s374] %v395
                %v397 = vld [vmem:[%s381 + $0x38] sm:%s374]
                %398 = vst [vmem:[%s382 + $0xc8] sm:%s374] %v397
              $region91: #{tpu_custom_call.1} parent=85 // loop_footer
                %s380 = sadd.s32 1, %s376
              $region92: #{tpu_custom_call.1} parent=85 // loop_footer_branch
                %375 = sbr.rel target = $region88
              $region93: #{tpu_custom_call.1} parent=85 // loop_exit
                _
            $region86: #{tpu_custom_call.1} parent=77 // pred_fallthru
              _
          $region78: #{tpu_custom_call.1} parent=73 // pred_fallthru
            _
          %427 = vnop
        $region74: #{tpu_custom_call.1} parent=65 // pred_fallthru
          _
      $region66: #{tpu_custom_call.1} parent=5 // pred_fallthru
        _
      %p428 = scmp.le.s32.totalorder 2, %s9
      // Predicated region
      $region109: #{tpu_custom_call.1} parent=5 // pred_check
        %p429 = pneg %p428
      $region110: #{tpu_custom_call.1} parent=5 // pred_check_branch
        %431 = sbr.rel (%p429) target = $region112
      $region111: #{tpu_custom_call.1} parent=5 // pred_region
        %s432 = ssub.s32 %s9, 2
        // Predicated region
        $region113: #{tpu_custom_call.1} parent=111 // pred_check
          %p433 = pneg %p106
        $region114: #{tpu_custom_call.1} parent=111 // pred_check_branch
          %435 = sbr.rel (%p433) target = $region116
        $region115: #{tpu_custom_call.1} parent=111 // pred_region
          %s436 = sand.u32 %s91, 1
          %s437 = sand.u32 %s91, 1
          %s438 = smul.addr %s437, 64
          %s439 = scalar_lea.vmem [#allocation3], %s438
        $region116: #{tpu_custom_call.1} parent=111 // pred_fallthru
          _
      $region112: #{tpu_custom_call.1} parent=5 // pred_fallthru
        _
    $region6: #{tpu_custom_call.1} parent=1 // loop_footer
      %s13 = sadd.s32 1, %s9
    $region7: #{tpu_custom_call.1} parent=1 // loop_footer_branch
      %8 = sbr.rel target = $region3
    $region8: #{tpu_custom_call.1} parent=1 // loop_exit
      _

</llo_original>
